<compile_context>
chip_gen: v7x
topology: tpu7x:2x2x1
jax: 0.10.0
libtpu: 0.0.40
codegen_flags: <defaults>
</compile_context>

<pallas_src>
import jax
import jax.numpy as jnp
from jax.experimental import pallas as pl
from jax.experimental.pallas import tpu as pltpu


def _round_up(x: int, m: int) -> int:
    return ((x + m - 1) // m) * m


def _cdiv(a: int, b: int) -> int:
    return (a + b - 1) // b


def _vmem_budget_bytes() -> int:
    """Generation-aware VMEM budget: 75% of per-core capacity, 96 MiB fallback."""
    try:
        cap = int(pltpu.get_tpu_info().vmem_capacity_bytes)
    except Exception:
        cap = 128 << 20
    return int(0.75 * cap)


# ----------------------------------------------------------------------------
# Kernels
# ----------------------------------------------------------------------------

def _spikes(h, thr):
    # LIF single step with bias folded into the threshold:
    #   spike = ((h + b) / tau >= 1)  <=>  (h >= tau - b)   [tau > 0]
    # Compare in f32 (safe on v5e: no bf16 VPU); store 0/1 as bf16 (exact).
    return jnp.where(h >= thr, jnp.float32(1.0), jnp.float32(0.0)).astype(jnp.bfloat16)


def _fc_kernel_no_target(x_ref, w1_ref, thr1_ref, spk_ref):
    h = jnp.dot(x_ref[...], w1_ref[...], preferred_element_type=jnp.float32)
    spk_ref[...] = _spikes(h, thr1_ref[...])


def _fc_kernel_target(x_ref, w1_ref, thr1_ref, w2_ref, thr2_ref, spk_ref, yt_ref):
    h = jnp.dot(x_ref[...], w1_ref[...], preferred_element_type=jnp.float32)
    s = _spikes(h, thr1_ref[...])
    spk_ref[...] = s
    g = jnp.dot(s, w2_ref[...], preferred_element_type=jnp.float32)
    yt_ref[...] = _spikes(g, thr2_ref[...])


def _fc_kernel_no_target_k(x_ref, w1_ref, thr1_ref, spk_ref, acc_ref):
    @pl.when(pl.program_id(1) == 0)
    def _():
        acc_ref[...] = jnp.zeros_like(acc_ref)

    acc_ref[...] += jnp.dot(x_ref[...], w1_ref[...],
                            preferred_element_type=jnp.float32)

    @pl.when(pl.program_id(1) == pl.num_programs(1) - 1)
    def _():
        spk_ref[...] = _spikes(acc_ref[...], thr1_ref[...])


def _fc_kernel_target_k(x_ref, w1_ref, thr1_ref, w2_ref, thr2_ref,
                        spk_ref, yt_ref, acc_ref):
    @pl.when(pl.program_id(1) == 0)
    def _():
        acc_ref[...] = jnp.zeros_like(acc_ref)

    acc_ref[...] += jnp.dot(x_ref[...], w1_ref[...],
                            preferred_element_type=jnp.float32)

    @pl.when(pl.program_id(1) == pl.num_programs(1) - 1)
    def _():
        s = _spikes(acc_ref[...], thr1_ref[...])
        spk_ref[...] = s
        g = jnp.dot(s, w2_ref[...], preferred_element_type=jnp.float32)
        yt_ref[...] = _spikes(g, thr2_ref[...])


# ----------------------------------------------------------------------------
# Parameter preparation (do once, reuse across calls)
# ----------------------------------------------------------------------------

def prepare_fc_block_params(w1, b1, w2=None, b2=None, *, tau: float,
                            target: bool = True, k_tile=None, vmem_budget=None):
    """Pad / transpose / cast FCBlock parameters once.

    w1: (D_out, D_in) f_fc.weight (PyTorch layout); b1: (D_out,)
    w2: (L, D_out)    t_fc.weight;                  b2: (L,)
    Weights are stored transposed ((K, N), bf16) and biases folded into
    per-column thresholds thr = tau - b (f32).
    """
    assert tau > 0.0, "spike rule spike=(h>=tau-b) assumes tau > 0"
    D_out, D_in = w1.shape
    if target:
        assert w2 is not None and b2 is not None
        L = int(w2.shape[0])
    else:
        L = 0
    if vmem_budget is None:
        vmem_budget = _vmem_budget_bytes()

    d_out_p = _round_up(D_out, 128)
    l_p = _round_up(L, 128) if target else 0
    d_in_p = _round_up(D_in, 128)

    # K-tiling decision: stream W1 in (tk, d_out_p) slabs when a resident W1
    # would exceed ~1/3 of the VMEM budget (e.g. 4096x4096 bf16 on v7x).
    w1_bytes = d_in_p * d_out_p * 2
    if k_tile is None:
        ktiled = w1_bytes > vmem_budget // 3
        if ktiled:
            k_tile = max(128, min(512, (vmem_budget // (16 * d_out_p)) // 128 * 128))
    else:
        ktiled = True
    if ktiled:
        k_tile = min(_round_up(int(k_tile), 128), d_in_p)
        d_in_p = _round_up(D_in, k_tile)
    else:
        k_tile = d_in_p

    f32, bf16 = jnp.float32, jnp.bfloat16
    # (K, N) layout -> native MXU feed, lane-dense 128 padding, bf16 operands.
    w1t = jnp.pad(jnp.asarray(w1, f32).T,
                  ((0, d_in_p - D_in), (0, d_out_p - D_out))).astype(bf16)
    # Padded output columns get +inf threshold so they never spike.
    thr1 = jnp.pad(jnp.float32(tau) - jnp.asarray(b1, f32),
                   (0, d_out_p - D_out),
                   constant_values=float("inf")).reshape(1, d_out_p)

    params = dict(w1t=w1t, thr1=thr1, w2t=None, thr2=None,
                  D_in=int(D_in), D_out=int(D_out), L=L,
                  d_in_p=d_in_p, d_out_p=d_out_p, l_p=l_p,
                  k_tile=int(k_tile), ktiled=bool(ktiled),
                  tau=float(tau), target=bool(target),
                  vmem_budget=int(vmem_budget))
    if target:
        w2t = jnp.pad(jnp.asarray(w2, f32).T,
                      ((0, d_out_p - D_out), (0, l_p - L))).astype(bf16)
        thr2 = jnp.pad(jnp.float32(tau) - jnp.asarray(b2, f32), (0, l_p - L),
                       constant_values=float("inf")).reshape(1, l_p)
        params["w2t"] = w2t
        params["thr2"] = thr2
    return params


# ----------------------------------------------------------------------------
# Forward
# ----------------------------------------------------------------------------

def _vmem_estimate(tb, tk, d_in_p, d_out_p, l_p, target, ktiled):
    est = 2 * tb * tk * 2                        # x tiles (bf16, double-buffered)
    if ktiled:
        est += 2 * tk * d_out_p * 2              # W1 K-slabs (bf16, double-buffered)
        est += tb * d_out_p * 4                  # f32 accumulator scratch
    else:
        est += d_in_p * d_out_p * 2              # resident W1 (constant index map)
    est += d_out_p * 4                           # thr1
    est += tb * d_out_p * 4 + tb * d_out_p * 2   # h (f32) + spikes (bf16)
    est += 2 * tb * d_out_p * 2                  # spike output tiles (bf16)
    if target:
        est += d_out_p * l_p * 2 + l_p * 4       # resident W2 + thr2
        est += tb * l_p * 4                      # g (f32)
        est += 2 * tb * l_p * 2                  # yt output tiles (bf16)
    return est


def fc_block_forward(x, params, *, target=None, max_batch_block=None):
    """FCBlock.forward. Returns (spikes (B, D_out) f32, y_t (B, L) f32 or None)."""
    if target is None:
        target = params["target"]
    if target and params["w2t"] is None:
        raise ValueError("params were prepared without a target head")

    B, D_in = x.shape
    assert D_in == params["D_in"]
    d_in_p, d_out_p, l_p = params["d_in_p"], params["d_out_p"], params["l_p"]
    D_out, L = params["D_out"], params["L"]
    ktiled, tk = params["ktiled"], params["k_tile"]
    budget = params["vmem_budget"]

    # Adaptive batch tile: last block nearly full; >=2 blocks when B allows so
    # the "parallel" batch axis can shard across two TensorCores (v7x).
    if max_batch_block is None:
        max_batch_block = 1024
    n_blocks = max(_cdiv(B, max_batch_block), 2 if B >= 16 else 1)
    tb = _round_up(_cdiv(B, n_blocks), 8)
    est = _vmem_estimate(tb, tk, d_in_p, d_out_p, l_p, target, ktiled)
    while tb > 8 and int(1.75 * est) > budget:
        tb = _round_up(tb // 2, 8)
        est = _vmem_estimate(tb, tk, d_in_p, d_out_p, l_p, target, ktiled)
    b_p = _round_up(B, tb)
    nb = b_p // tb

    bf16, f32 = jnp.bfloat16, jnp.float32
    x_p = jnp.asarray(x).astype(bf16)
    if (b_p, d_in_p) != (B, D_in):
        x_p = jnp.pad(x_p, ((0, b_p - B), (0, d_in_p - D_in)))

    vmem_limit = int(min(max(int(1.75 * est), 16 << 20), budget))

    out_shapes = [jax.ShapeDtypeStruct((b_p, d_out_p), bf16)]
    if target:
        out_shapes.append(jax.ShapeDtypeStruct((b_p, l_p), bf16))

    if not ktiled:
        grid = (nb,)
        in_specs = [
            pl.BlockSpec((tb, d_in_p), lambda i: (i, 0)),
            pl.BlockSpec((d_in_p, d_out_p), lambda i: (0, 0)),   # VMEM-resident
            pl.BlockSpec((1, d_out_p), lambda i: (0, 0)),
        ]
        out_specs = [pl.BlockSpec((tb, d_out_p), lambda i: (i, 0))]
        args = [x_p, params["w1t"], params["thr1"]]
        if target:
            in_specs += [pl.BlockSpec((d_out_p, l_p), lambda i: (0, 0)),
                         pl.BlockSpec((1, l_p), lambda i: (0, 0))]
            out_specs.append(pl.BlockSpec((tb, l_p), lambda i: (i, 0)))
            args += [params["w2t"], params["thr2"]]
            kernel = _fc_kernel_target
        else:
            kernel = _fc_kernel_no_target
        scratch_shapes = []
        dim_sem = ("parallel",)
    else:
        nk = d_in_p // tk
        grid = (nb, nk)                                          # reduction axis last
        in_specs = [
            pl.BlockSpec((tb, tk), lambda i, k: (i, k)),
            pl.BlockSpec((tk, d_out_p), lambda i, k: (k, 0)),    # W1 streamed over K
            pl.BlockSpec((1, d_out_p), lambda i, k: (0, 0)),
        ]
        out_specs = [pl.BlockSpec((tb, d_out_p), lambda i, k: (i, 0))]
        args = [x_p, params["w1t"], params["thr1"]]
        if target:
            in_specs += [pl.BlockSpec((d_out_p, l_p), lambda i, k: (0, 0)),
                         pl.BlockSpec((1, l_p), lambda i, k: (0, 0))]
            out_specs.append(pl.BlockSpec((tb, l_p), lambda i, k: (i, 0)))
            args += [params["w2t"], params["thr2"]]
            kernel = _fc_kernel_target_k
        else:
            kernel = _fc_kernel_no_target_k
        scratch_shapes = [pltpu.VMEM((tb, d_out_p), f32)]
        dim_sem = ("parallel", "arbitrary")

    outs = pl.pallas_call(
        kernel,
        grid=grid,
        out_shape=tuple(out_shapes) if target else out_shapes[0],
        in_specs=in_specs,
        out_specs=tuple(out_specs) if target else out_specs[0],
        scratch_shapes=scratch_shapes,
        compiler_params=pltpu.CompilerParams(
            dimension_semantics=dim_sem,
            vmem_limit_bytes=vmem_limit,
        ),
    )(*args)

    if target:
        spk_p, yt_p = outs
        return spk_p[:B, :D_out].astype(f32), yt_p[:B, :L].astype(f32)
    return outs[:B, :D_out].astype(f32), None


# ----------------------------------------------------------------------------
# Reference + demo
# ----------------------------------------------------------------------------

def _ref_forward(x, w1, b1, w2, b2, tau):
    """Pure-JAX reference with the same bf16-operand / folded-threshold numerics."""
    bf16 = jnp.bfloat16
    h = jnp.dot(x.astype(bf16), w1.astype(bf16).T, preferred_element_type=jnp.float32)
    s = (h >= (jnp.float32(tau) - b1)).astype(jnp.float32)
    g = jnp.dot(s.astype(bf16), w2.astype(bf16).T, preferred_element_type=jnp.float32)
    yt = (g >= (jnp.float32(tau) - b2)).astype(jnp.float32)
    return s, yt


if __name__ == "__main__":
    # Small shapes consistent with FCBlock(input_size, output_size, label_size).
    B, D_IN, D_OUT, LABEL = 24, 32, 64, 16
    TAU = 2.0

    key = jax.random.PRNGKey(0)
    kx, kw1, kb1, kw2, kb2, kx2, kw1b = jax.random.split(key, 7)

    lim1 = 1.0 / jnp.sqrt(jnp.float32(D_IN))
    w1 = jax.random.uniform(kw1, (D_OUT, D_IN), jnp.float32, -lim1, lim1)
    b1 = jax.random.uniform(kb1, (D_OUT,), jnp.float32, -lim1, lim1)
    lim2 = 1.0 / jnp.sqrt(jnp.float32(D_OUT))
    lim2b = 0.5 / jnp.sqrt(jnp.float32(D_OUT))  # set_t_layer_bias_parameters(lc_ampl=0.5)
    w2 = jax.random.uniform(kw2, (LABEL, D_OUT), jnp.float32, -lim2, lim2)
    b2 = jax.random.uniform(kb2, (LABEL,), jnp.float32, -lim2b, lim2b)

    # Input scaled so some neurons cross threshold.
    x = 4.0 * jax.random.normal(kx, (B, D_IN), jnp.float32)

    # One-time parameter preparation (pad / transpose / bf16 / bias-fold).
    params = prepare_fc_block_params(w1, b1, w2, b2, tau=TAU, target=True)

    # max_batch_block=8 -> 3 batch blocks: exercises the pipelined parallel grid.
    spk, y_t = fc_block_forward(x, params, target=True, max_batch_block=8)
    spk = jax.block_until_ready(spk)
    y_t = jax.block_until_ready(y_t)

    spk_nt, y_nt = fc_block_forward(x, params, target=False, max_batch_block=8)
    spk_nt = jax.block_until_ready(spk_nt)

    spk_ref, yt_ref = _ref_forward(x, w1, b1, w2, b2, TAU)
    assert spk.shape == (B, D_OUT) and y_t.shape == (B, LABEL)
    assert y_nt is None
    assert jnp.array_equal(spk, spk_ref), "f branch mismatch"
    assert jnp.array_equal(y_t, yt_ref), "t branch mismatch"
    assert jnp.array_equal(spk_nt, spk), "target=False branch mismatch"

    # Exercise the K-tiled (streamed-W1 + accumulator) path at small scale by
    # forcing k_tile=128 with D_in=300 (3 K-blocks after padding).
    D_IN2 = 300
    lim1b = 1.0 / jnp.sqrt(jnp.float32(D_IN2))
    w1b = jax.random.uniform(kw1b, (D_OUT, D_IN2), jnp.float32, -lim1b, lim1b)
    x2 = 4.0 * jax.random.normal(kx2, (B, D_IN2), jnp.float32)
    params_k = prepare_fc_block_params(w1b, b1, w2, b2, tau=TAU, target=True,
                                       k_tile=128)
    spk2, yt2 = fc_block_forward(x2, params_k, target=True, max_batch_block=8)
    spk2 = jax.block_until_ready(spk2)
    yt2 = jax.block_until_ready(yt2)
    spk2_ref, yt2_ref = _ref_forward(x2, w1b, b1, w2, b2, TAU)
    assert jnp.array_equal(spk2, spk2_ref), "k-tiled f branch mismatch"
    assert jnp.array_equal(yt2, yt2_ref), "k-tiled t branch mismatch"

    print("KERNEL_OK")
</pallas_src>

<mosaic_0001>
module attributes {stable_mosaic.version = 11 : i64} {
  func.func @_fc_kernel_target(%arg0: i32, %arg1: memref<8x128xbf16, #tpu.memory_space<vmem>>, %arg2: memref<128x128xbf16, #tpu.memory_space<vmem>>, %arg3: memref<1x128xf32, #tpu.memory_space<vmem>>, %arg4: memref<128x128xbf16, #tpu.memory_space<vmem>>, %arg5: memref<1x128xf32, #tpu.memory_space<vmem>>, %arg6: memref<8x128xbf16, #tpu.memory_space<vmem>>, %arg7: memref<8x128xbf16, #tpu.memory_space<vmem>>) attributes {dimension_semantics = [#tpu.dimension_semantics<parallel>], iteration_bounds = array<i64: 3>, scalar_prefetch = 0 : i64, scratch_operands = 0 : i64, tpu.core_type = #tpu.core_type<tc>, window_params = [{transform_indices = @transform_0, window_bounds = array<i64: 8, 128>}, {pipeline_mode = #tpu.pipeline_mode<synchronous>, transform_indices = @transform_1, window_bounds = array<i64: 128, 128>}, {pipeline_mode = #tpu.pipeline_mode<synchronous>, transform_indices = @transform_2, window_bounds = array<i64: 1, 128>}, {pipeline_mode = #tpu.pipeline_mode<synchronous>, transform_indices = @transform_3, window_bounds = array<i64: 128, 128>}, {pipeline_mode = #tpu.pipeline_mode<synchronous>, transform_indices = @transform_4, window_bounds = array<i64: 1, 128>}, {transform_indices = @transform_5, window_bounds = array<i64: 8, 128>}, {transform_indices = @transform_6, window_bounds = array<i64: 8, 128>}]} {
    %c0 = arith.constant 0 : index
    %c0_0 = arith.constant 0 : index
    %0 = vector.load %arg1[%c0, %c0_0] : memref<8x128xbf16, #tpu.memory_space<vmem>>, vector<8x128xbf16>
    %c0_1 = arith.constant 0 : index
    %c0_2 = arith.constant 0 : index
    %1 = vector.load %arg2[%c0_1, %c0_2] : memref<128x128xbf16, #tpu.memory_space<vmem>>, vector<128x128xbf16>
    %cst = arith.constant dense<0.000000e+00> : vector<8x128xf32>
    %2 = tpu.matmul %0, %1, %cst {dimension_numbers = #tpu.dot_dimension_numbers<[1], [0], [0], [1], [0, 0, 1, 1], [], []>} : vector<8x128xbf16>, vector<128x128xbf16>, vector<8x128xf32> -> vector<8x128xf32>
    %c0_3 = arith.constant 0 : index
    %c0_4 = arith.constant 0 : index
    %3 = vector.load %arg3[%c0_3, %c0_4] : memref<1x128xf32, #tpu.memory_space<vmem>>, vector<1x128xf32>
    %4 = vector.broadcast %3 : vector<1x128xf32> to vector<8x128xf32>
    %5 = arith.cmpf oge, %2, %4 : vector<8x128xf32>
    %cst_5 = arith.constant 1.000000e+00 : f32
    %cst_6 = arith.constant 0.000000e+00 : f32
    %6 = vector.broadcast %cst_5 : f32 to vector<8x128xf32>
    %7 = vector.broadcast %cst_6 : f32 to vector<8x128xf32>
    %8 = arith.select %5, %6, %7 : vector<8x128xi1>, vector<8x128xf32>
    %9 = arith.truncf %8 : vector<8x128xf32> to vector<8x128xbf16>
    %c0_7 = arith.constant 0 : index
    %c0_8 = arith.constant 0 : index
    %10 = vector.load %arg6[%c0_7, %c0_8] : memref<8x128xbf16, #tpu.memory_space<vmem>>, vector<8x128xbf16>
    tpu.vector_store %arg6[%c0_7, %c0_8], %9 {strides = array<i32>} : memref<8x128xbf16, #tpu.memory_space<vmem>>, vector<8x128xbf16>,
    %c0_9 = arith.constant 0 : index
    %c0_10 = arith.constant 0 : index
    %11 = vector.load %arg4[%c0_9, %c0_10] : memref<128x128xbf16, #tpu.memory_space<vmem>>, vector<128x128xbf16>
    %cst_11 = arith.constant dense<0.000000e+00> : vector<8x128xf32>
    %12 = tpu.matmul %9, %11, %cst_11 {dimension_numbers = #tpu.dot_dimension_numbers<[1], [0], [0], [1], [0, 0, 1, 1], [], []>} : vector<8x128xbf16>, vector<128x128xbf16>, vector<8x128xf32> -> vector<8x128xf32>
    %c0_12 = arith.constant 0 : index
    %c0_13 = arith.constant 0 : index
    %13 = vector.load %arg5[%c0_12, %c0_13] : memref<1x128xf32, #tpu.memory_space<vmem>>, vector<1x128xf32>
    %14 = vector.broadcast %13 : vector<1x128xf32> to vector<8x128xf32>
    %15 = arith.cmpf oge, %12, %14 : vector<8x128xf32>
    %cst_14 = arith.constant 1.000000e+00 : f32
    %cst_15 = arith.constant 0.000000e+00 : f32
    %16 = vector.broadcast %cst_14 : f32 to vector<8x128xf32>
    %17 = vector.broadcast %cst_15 : f32 to vector<8x128xf32>
    %18 = arith.select %15, %16, %17 : vector<8x128xi1>, vector<8x128xf32>
    %19 = arith.truncf %18 : vector<8x128xf32> to vector<8x128xbf16>
    %c0_16 = arith.constant 0 : index
    %c0_17 = arith.constant 0 : index
    %20 = vector.load %arg7[%c0_16, %c0_17] : memref<8x128xbf16, #tpu.memory_space<vmem>>, vector<8x128xbf16>
    tpu.vector_store %arg7[%c0_16, %c0_17], %19 {strides = array<i32>} : memref<8x128xbf16, #tpu.memory_space<vmem>>, vector<8x128xbf16>,
    return
  }
  func.func @transform_0(%arg0: i32) -> (i32, i32) {
    %c0_i32 = arith.constant 0 : i32
    %c0_i32_0 = arith.constant 0 : i32
    return %arg0, %c0_i32 : i32, i32
  }
  func.func @transform_1(%arg0: i32) -> (i32, i32) {
    %c0_i32 = arith.constant 0 : i32
    %c0_i32_0 = arith.constant 0 : i32
    %c0_i32_1 = arith.constant 0 : i32
    return %c0_i32, %c0_i32_0 : i32, i32
  }
  func.func @transform_2(%arg0: i32) -> (i32, i32) {
    %c0_i32 = arith.constant 0 : i32
    %c0_i32_0 = arith.constant 0 : i32
    %c0_i32_1 = arith.constant 0 : i32
    return %c0_i32, %c0_i32_0 : i32, i32
  }
  func.func @transform_3(%arg0: i32) -> (i32, i32) {
    %c0_i32 = arith.constant 0 : i32
    %c0_i32_0 = arith.constant 0 : i32
    %c0_i32_1 = arith.constant 0 : i32
    return %c0_i32, %c0_i32_0 : i32, i32
  }
  func.func @transform_4(%arg0: i32) -> (i32, i32) {
    %c0_i32 = arith.constant 0 : i32
    %c0_i32_0 = arith.constant 0 : i32
    %c0_i32_1 = arith.constant 0 : i32
    return %c0_i32, %c0_i32_0 : i32, i32
  }
  func.func @transform_5(%arg0: i32) -> (i32, i32) {
    %c0_i32 = arith.constant 0 : i32
    %c0_i32_0 = arith.constant 0 : i32
    return %arg0, %c0_i32 : i32, i32
  }
  func.func @transform_6(%arg0: i32) -> (i32, i32) {
    %c0_i32 = arith.constant 0 : i32
    %c0_i32_0 = arith.constant 0 : i32
    return %arg0, %c0_i32 : i32, i32
  }
}

</mosaic_0001>

<llo_original>
// kernel: tpu_custom_call.1
$region0: #{tpu_custom_call.1}
  #allocation0 [shape = 'u32[]', space=smem, size = 0x4, offset = 0x4, fixed_abs, tag = 'smem constant byte address 0x4 - core index']
  #allocation1 [shape = 'u32[144,128]{1,0:T(1,128)}', space=vmem, size = 0x12000, scoped, tag = 'internal scratch']
  %s0 = inlined_call_operand.hbm [shape: bf16[24,128], index: 0, kind: input, shape index: {}]
  %s1 = inlined_call_operand.hbm [shape: bf16[128,128], index: 1, kind: input, shape index: {}]
  %s2 = inlined_call_operand.vmem [shape: f32[1,128], index: 2, kind: input, shape index: {}]
  %s3 = inlined_call_operand.hbm [shape: bf16[128,128], index: 3, kind: input, shape index: {}]
  %s4 = inlined_call_operand.vmem [shape: f32[1,128], index: 4, kind: input, shape index: {}]
  %s5 = inlined_call_operand.hbm [shape: bf16[24,128], index: 5, kind: output, shape index: {0}]
  %s6 = inlined_call_operand.hbm [shape: bf16[24,128], index: 6, kind: output, shape index: {1}]
  %7 = xla_tuple %s5, %s6
  %s8 = sld [smem:[#allocation0]]
  $region73: #{tpu_custom_call.1} parent=0
    _
  %s10 = ssub.s32 1, %s8
  %s11 = scalar_select 0, %s10, %s8
  $region1: #{tpu_custom_call.1} parent=0
    #allocation2 [shape = 'u8[4096]{0}', space=vmem, size = 0x1000, scoped, tag = 'input window, operand 0']
    #allocation3 [shape = 's32[2]{0}', space=sflag, size = 0x8, scoped, tag = 'scoped memory for tpu_custom_call.1']
    #allocation4 [shape = 's32[2]{0}', space=sflag, size = 0x8, scoped, tag = 'scoped memory for tpu_custom_call.1']
    #allocation5 [shape = 'u8[32768]{0}', space=vmem, size = 0x8000, scoped, tag = 'input window, operand 1, single buffered']
    #allocation6 [shape = 's32[1]{0}', space=sflag, size = 0x4, scoped, tag = 'scoped memory for tpu_custom_call.1']
    #allocation7 [shape = 'u8[32768]{0}', space=vmem, size = 0x8000, scoped, tag = 'input window, operand 3, single buffered']
    #allocation8 [shape = 'u8[4096]{0}', space=vmem, size = 0x1000, scoped, tag = 'output window, operand 0']
    #allocation9 [shape = 'u8[4096]{0}', space=vmem, size = 0x1000, scoped, tag = 'output window, operand 1']
    #allocation10 [shape = 's32[2]{0}', space=sflag, size = 0x8, scoped, tag = 'scoped memory for tpu_custom_call.1']
    %12 = vsyncpa [#allocation3], 0
    %s13 = scalar_lea.sflag [#allocation3], 1
    %14 = vsyncpa %s13, 0
    %15 = vsyncpa [#allocation6], 0
    %16 = vsyncpa [#allocation4], 0
    %s17 = scalar_lea.sflag [#allocation4], 1
    %18 = vsyncpa %s17, 0
    %19 = vsyncpa [#allocation10], 0
    %s20 = scalar_lea.sflag [#allocation10], 1
    %21 = vsyncpa %s20, 0
    loop: start=0, step=1, limit=5
    $region2: #{tpu_custom_call.1} parent=1 // loop_pre_header
      _
    $region3: #{tpu_custom_call.1} parent=1 // loop_header
      %s23 = sphi 0, %s27
      %p24 = scmp.ge.s32.totalorder %s23, 5
      %s33 = sphi 0, %s35
      %s36 = sphi 0, %s33
      %s37 = sphi 0, %s36
      %s53 = sphi 0, %s37
      %s57 = sphi 0, %s57
      %s59 = sphi 0, %s57
      %s60 = sphi 0, %s59
      %s74 = sphi 0, %s60
      %s78 = sphi 0, %s78
      %s80 = sphi 0, %s78
      %s81 = sphi 0, %s80
      %s95 = sphi 0, %s81
      %s99 = sphi 0, %s99
      %s101 = sphi 0, %s99
      %s102 = sphi 0, %s101
      %s116 = sphi 0, %s102
      %s120 = sphi 0, %s120
      %s122 = sphi 0, %s120
      %s123 = sphi 0, %s122
      %s137 = sphi 0, %s123
      %s143 = sphi 0, %s145
      %s146 = sphi 0, %s143
      %s147 = sphi 0, %s146
      %s163 = sphi 0, %s147
      %s169 = sphi 0, %s171
      %s172 = sphi 0, %s169
      %s173 = sphi 0, %s172
      %s189 = sphi 0, %s173
    $region4: #{tpu_custom_call.1} parent=1 // loop_header_branch
      %26 = sbr.rel (%p24) target = $region8
    $region5: #{tpu_custom_call.1} parent=1 // loop_body
      %s28 = ssub.s32 %s23, 1
      %s29 = ssub.s32 %s23, 2
      %s30 = sadd.s32 %s23, 1
      %s31 = ssub.s32 %s23, %s30
      %p32 = scmp.eq.s32.totalorder %s31, 0
      %s34 = sadd.s32 %s33, 1
      %s35 = scalar_select %p32, %s33, %s34
      %p38 = pneg %p32
      %p39 = scmp.eq.s32.totalorder %s23, 2
      %p40 = por %p38, %p39
      %p41 = scmp.ne.s32.totalorder %s33, %s36
      %p42 = scmp.eq.s32.totalorder %s23, 0
      %p43 = por %p41, %p42
      %p44 = scmp.ne.s32.totalorder %s33, %s36
      %p45 = scmp.eq.s32.totalorder %s28, 2
      %p46 = por %p44, %p45
      %p47 = scmp.ne.s32.totalorder %s36, %s37
      %p48 = scmp.eq.s32.totalorder %s28, 0
      %p49 = por %p47, %p48
      %p50 = scmp.ne.s32.totalorder %s36, %s37
      %p51 = scmp.eq.s32.totalorder %s29, 2
      %p52 = por %p50, %p51
      %p54 = scmp.ne.s32.totalorder %s37, %s53
      %p55 = scmp.eq.s32.totalorder %s29, 0
      %p56 = por %p54, %p55
      %s58 = sadd.s32 %s57, 1
      %p61 = scmp.eq.s32.totalorder %s23, 2
      %p62 = scmp.ne.s32.totalorder %s57, %s59
      %p63 = scmp.eq.s32.totalorder %s23, 0
      %p64 = por %p62, %p63
      %p65 = scmp.ne.s32.totalorder %s57, %s59
      %p66 = scmp.eq.s32.totalorder %s28, 2
      %p67 = por %p65, %p66
      %p68 = scmp.ne.s32.totalorder %s59, %s60
      %p69 = scmp.eq.s32.totalorder %s28, 0
      %p70 = por %p68, %p69
      %p71 = scmp.ne.s32.totalorder %s59, %s60
      %p72 = scmp.eq.s32.totalorder %s29, 2
      %p73 = por %p71, %p72
      %p75 = scmp.ne.s32.totalorder %s60, %s74
      %p76 = scmp.eq.s32.totalorder %s29, 0
      %p77 = por %p75, %p76
      %s79 = sadd.s32 %s78, 1
      %p82 = scmp.eq.s32.totalorder %s23, 2
      %p83 = scmp.ne.s32.totalorder %s78, %s80
      %p84 = scmp.eq.s32.totalorder %s23, 0
      %p85 = por %p83, %p84
      %p86 = scmp.ne.s32.totalorder %s78, %s80
      %p87 = scmp.eq.s32.totalorder %s28, 2
      %p88 = por %p86, %p87
      %p89 = scmp.ne.s32.totalorder %s80, %s81
      %p90 = scmp.eq.s32.totalorder %s28, 0
      %p91 = por %p89, %p90
      %p92 = scmp.ne.s32.totalorder %s80, %s81
      %p93 = scmp.eq.s32.totalorder %s29, 2
      %p94 = por %p92, %p93
      %p96 = scmp.ne.s32.totalorder %s81, %s95
      %p97 = scmp.eq.s32.totalorder %s29, 0
      %p98 = por %p96, %p97
      %s100 = sadd.s32 %s99, 1
      %p103 = scmp.eq.s32.totalorder %s23, 2
      %p104 = scmp.ne.s32.totalorder %s99, %s101
      %p105 = scmp.eq.s32.totalorder %s23, 0
      %p106 = por %p104, %p105
      %p107 = scmp.ne.s32.totalorder %s99, %s101
      %p108 = scmp.eq.s32.totalorder %s28, 2
      %p109 = por %p107, %p108
      %p110 = scmp.ne.s32.totalorder %s101, %s102
      %p111 = scmp.eq.s32.totalorder %s28, 0
      %p112 = por %p110, %p111
      %p113 = scmp.ne.s32.totalorder %s101, %s102
      %p114 = scmp.eq.s32.totalorder %s29, 2
      %p115 = por %p113, %p114
      %p117 = scmp.ne.s32.totalorder %s102, %s116
      %p118 = scmp.eq.s32.totalorder %s29, 0
      %p119 = por %p117, %p118
      %s121 = sadd.s32 %s120, 1
      %p124 = scmp.eq.s32.totalorder %s23, 2
      %p125 = scmp.ne.s32.totalorder %s120, %s122
      %p126 = scmp.eq.s32.totalorder %s23, 0
      %p127 = por %p125, %p126
      %p128 = scmp.ne.s32.totalorder %s120, %s122
      %p129 = scmp.eq.s32.totalorder %s28, 2
      %p130 = por %p128, %p129
      %p131 = scmp.ne.s32.totalorder %s122, %s123
      %p132 = scmp.eq.s32.totalorder %s28, 0
      %p133 = por %p131, %p132
      %p134 = scmp.ne.s32.totalorder %s122, %s123
      %p135 = scmp.eq.s32.totalorder %s29, 2
      %p136 = por %p134, %p135
      %p138 = scmp.ne.s32.totalorder %s123, %s137
      %p139 = scmp.eq.s32.totalorder %s29, 0
      %p140 = por %p138, %p139
      %s141 = ssub.s32 %s23, %s30
      %p142 = scmp.eq.s32.totalorder %s141, 0
      %s144 = sadd.s32 %s143, 1
      %s145 = scalar_select %p142, %s143, %s144
      %p148 = pneg %p142
      %p149 = scmp.eq.s32.totalorder %s23, 2
      %p150 = por %p148, %p149
      %p151 = scmp.ne.s32.totalorder %s143, %s146
      %p152 = scmp.eq.s32.totalorder %s23, 0
      %p153 = por %p151, %p152
      %p154 = scmp.ne.s32.totalorder %s143, %s146
      %p155 = scmp.eq.s32.totalorder %s28, 2
      %p156 = por %p154, %p155
      %p157 = scmp.ne.s32.totalorder %s146, %s147
      %p158 = scmp.eq.s32.totalorder %s28, 0
      %p159 = por %p157, %p158
      %p160 = scmp.ne.s32.totalorder %s146, %s147
      %p161 = scmp.eq.s32.totalorder %s29, 2
      %p162 = por %p160, %p161
      %p164 = scmp.ne.s32.totalorder %s147, %s163
      %p165 = scmp.eq.s32.totalorder %s29, 0
      %p166 = por %p164, %p165
      %s167 = ssub.s32 %s23, %s30
      %p168 = scmp.eq.s32.totalorder %s167, 0
      %s170 = sadd.s32 %s169, 1
      %s171 = scalar_select %p168, %s169, %s170
      %p174 = pneg %p168
      %p175 = scmp.eq.s32.totalorder %s23, 2
      %p176 = por %p174, %p175
      %p177 = scmp.ne.s32.totalorder %s169, %s172
      %p178 = scmp.eq.s32.totalorder %s23, 0
      %p179 = por %p177, %p178
      %p180 = scmp.ne.s32.totalorder %s169, %s172
      %p181 = scmp.eq.s32.totalorder %s28, 2
      %p182 = por %p180, %p181
      %p183 = scmp.ne.s32.totalorder %s172, %s173
      %p184 = scmp.eq.s32.totalorder %s28, 0
      %p185 = por %p183, %p184
      %p186 = scmp.ne.s32.totalorder %s172, %s173
      %p187 = scmp.eq.s32.totalorder %s29, 2
      %p188 = por %p186, %p187
      %p190 = scmp.ne.s32.totalorder %s173, %s189
      %p191 = scmp.eq.s32.totalorder %s29, 0
      %p192 = por %p190, %p191
      %p193 = scmp.le.s32.totalorder 1, %s23
      %p194 = scmp.lt.s32.totalorder %s23, 4
      %p195 = pnand %p193, %p194
      %p196 = pneg %p195
      // Predicated region
      $region9: #{tpu_custom_call.1} parent=5 // pred_check
        _
      $region10: #{tpu_custom_call.1} parent=5 // pred_check_branch
        %198 = sbr.rel (%p195) target = $region12
      $region11: #{tpu_custom_call.1} parent=5 // pred_region
        %s199 = ssub.s32 %s23, 1
        // Predicated region
        $region13: #{tpu_custom_call.1} parent=11 // pred_check
          %p200 = pneg %p70
        $region14: #{tpu_custom_call.1} parent=11 // pred_check_branch
          %202 = sbr.rel (%p200) target = $region16
        $region15: #{tpu_custom_call.1} parent=11 // pred_region
          %s204 = ssub.s32 1024, 1024
          %205 = vsyncadd [#allocation6], %s204
          %s206 = sshll.u32 [#allocation5], 4
          %s207 = int_to_ptr.vmem [resolvable:$true] %s206
          %212 = dma.hbm_to_vmem [thread:$0]  %s1, 1024, %s207, [#allocation6], 64, 64, 4
        $region16: #{tpu_custom_call.1} parent=11 // pred_fallthru
          _
        // Predicated region
        $region17: #{tpu_custom_call.1} parent=11 // pred_check
          %p213 = pneg %p91
        $region18: #{tpu_custom_call.1} parent=11 // pred_check_branch
          %215 = sbr.rel (%p213) target = $region20
        $region19: #{tpu_custom_call.1} parent=11 // pred_region
          _
        $region20: #{tpu_custom_call.1} parent=11 // pred_fallthru
          _
        // Predicated region
        $region21: #{tpu_custom_call.1} parent=11 // pred_check
          %p216 = pneg %p112
        $region22: #{tpu_custom_call.1} parent=11 // pred_check_branch
          %218 = sbr.rel (%p216) target = $region24
        $region23: #{tpu_custom_call.1} parent=11 // pred_region
          %s220 = ssub.s32 1024, 1024
          %221 = vsyncadd [#allocation6], %s220
          %s222 = sshll.u32 [#allocation7], 4
          %s223 = int_to_ptr.vmem [resolvable:$true] %s222
          %228 = dma.hbm_to_vmem [thread:$0]  %s3, 1024, %s223, [#allocation6], 64, 64, 4
        $region24: #{tpu_custom_call.1} parent=11 // pred_fallthru
          _
        // Predicated region
        $region25: #{tpu_custom_call.1} parent=11 // pred_check
          %p229 = pneg %p133
        $region26: #{tpu_custom_call.1} parent=11 // pred_check_branch
          %231 = sbr.rel (%p229) target = $region28
        $region27: #{tpu_custom_call.1} parent=11 // pred_region
          _
        $region28: #{tpu_custom_call.1} parent=11 // pred_fallthru
          _
      $region12: #{tpu_custom_call.1} parent=5 // pred_fallthru
        _
      %p232 = scmp.lt.s32.totalorder %s23, 3
      // Predicated region
      $region29: #{tpu_custom_call.1} parent=5 // pred_check
        %p233 = pneg %p232
      $region30: #{tpu_custom_call.1} parent=5 // pred_check_branch
        %235 = sbr.rel (%p233) target = $region32
      $region31: #{tpu_custom_call.1} parent=5 // pred_region
        // Predicated region
        $region33: #{tpu_custom_call.1} parent=31 // pred_check
          %p236 = pneg %p43
        $region34: #{tpu_custom_call.1} parent=31 // pred_check_branch
          %238 = sbr.rel (%p236) target = $region36
        $region35: #{tpu_custom_call.1} parent=31 // pred_region
          %s239 = sand.u32 %s33, 1
          %s240 = scalar_lea.sflag [#allocation3], %s239
          %s241 = sand.u32 %s33, 1
          %s242 = smul.addr %s241, 4
          %s243 = scalar_lea.vmem [#allocation2], %s242
          %s245 = ssub.s32 64, 64
          %246 = vsyncadd %s240, %s245
          %s247 = smul.addr %s23, 64
          %s248 = scalar_lea.hbm %s0, %s247
          %s250 = sshll.u32 %s243, 4
          %s251 = int_to_ptr.vmem [resolvable:$true] %s250
          %253 = dma.hbm_to_vmem [thread:$0]  %s248, 64, %s251, %s240
        $region36: #{tpu_custom_call.1} parent=31 // pred_fallthru
          _
      $region32: #{tpu_custom_call.1} parent=5 // pred_fallthru
        _
      %p254 = scmp.le.s32.totalorder 1, %s23
      %p255 = scmp.lt.s32.totalorder %s23, 4
      %p256 = pnand %p254, %p255
      %p257 = pneg %p256
      // Predicated region
      $region37: #{tpu_custom_call.1} parent=5 // pred_check
        _
      $region38: #{tpu_custom_call.1} parent=5 // pred_check_branch
        %259 = sbr.rel (%p256) target = $region40
      $region39: #{tpu_custom_call.1} parent=5 // pred_region
        %s260 = ssub.s32 %s23, 1
        %s261 = sand.u32 %s36, 1
        %s262 = scalar_lea.sflag [#allocation3], %s261
        %s263 = sand.u32 %s36, 1
        %s264 = smul.addr %s263, 4
        %s265 = scalar_lea.vmem [#allocation2], %s264
        // Predicated region
        $region41: #{tpu_custom_call.1} parent=39 // pred_check
          %p266 = pneg %p49
        $region42: #{tpu_custom_call.1} parent=39 // pred_check_branch
          %268 = sbr.rel (%p266) target = $region44
        $region43: #{tpu_custom_call.1} parent=39 // pred_region
          %269 = dma.done %s262, 64
        $region44: #{tpu_custom_call.1} parent=39 // pred_fallthru
          _
        // Predicated region
        $region45: #{tpu_custom_call.1} parent=39 // pred_check
          %p270 = pneg %p70
        $region46: #{tpu_custom_call.1} parent=39 // pred_check_branch
          %272 = sbr.rel (%p270) target = $region48
        $region47: #{tpu_custom_call.1} parent=39 // pred_region
          %273 = dma.done [#allocation6], 1024
        $region48: #{tpu_custom_call.1} parent=39 // pred_fallthru
          _
        // Predicated region
        $region49: #{tpu_custom_call.1} parent=39 // pred_check
          %p274 = pneg %p112
        $region50: #{tpu_custom_call.1} parent=39 // pred_check_branch
          %276 = sbr.rel (%p274) target = $region52
        $region51: #{tpu_custom_call.1} parent=39 // pred_region
          %277 = dma.done [#allocation6], 1024
        $region52: #{tpu_custom_call.1} parent=39 // pred_fallthru
          _
        %s278 = sand.u32 %s36, 1
        %s279 = scalar_lea.sflag [#allocation3], %s278
        %s280 = sand.u32 %s36, 1
        %s281 = smul.addr %s280, 4
        %s282 = scalar_lea.vmem [#allocation2], %s281
        %p283 = pneg %p49
        %p284 = pneg %p46
        %p285 = pneg %p70
        %p286 = pneg %p67
        %p287 = pneg %p91
        %p288 = pneg %p88
        %p289 = pneg %p112
        %p290 = pneg %p109
        %p291 = pneg %p133
        %p292 = pneg %p130
        %p293 = pneg %p159
        %p294 = pneg %p156
        %s295 = sand.u32 %s146, 1
        %s296 = scalar_lea.sflag [#allocation4], %s295
        %s297 = sand.u32 %s146, 1
        %s298 = smul.addr %s297, 4
        %s299 = scalar_lea.vmem [#allocation8], %s298
        %p300 = pneg %p185
        %p301 = pneg %p182
        %s302 = sand.u32 %s172, 1
        %s303 = scalar_lea.sflag [#allocation10], %s302
        %s304 = sand.u32 %s172, 1
        %s305 = smul.addr %s304, 4
        %s306 = scalar_lea.vmem [#allocation9], %s305
        %v308 = vld [vmem:[%s265] sm:$0xf]
        %v309 = vld [vmem:[#allocation5] sm:$0xf]
        %v310 = vld [vmem:[#allocation5 + $0x4] sm:$0xf]
        %v311 = vld [vmem:[#allocation5 + $0x8] sm:$0xf]
        %v312 = vld [vmem:[#allocation5 + $0xc] sm:$0xf]
        %v313 = vld [vmem:[#allocation5 + $0x10] sm:$0xf]
        %v314 = vld [vmem:[#allocation5 + $0x14] sm:$0xf]
        %v315 = vld [vmem:[#allocation5 + $0x18] sm:$0xf]
        %v316 = vld [vmem:[#allocation5 + $0x1c] sm:$0xf]
        %v317 = vld [vmem:[#allocation5 + $0x20] sm:$0xf]
        %v318 = vld [vmem:[#allocation5 + $0x24] sm:$0xf]
        %v319 = vld [vmem:[#allocation5 + $0x28] sm:$0xf]
        %v320 = vld [vmem:[#allocation5 + $0x2c] sm:$0xf]
        %v321 = vld [vmem:[#allocation5 + $0x30] sm:$0xf]
        %v322 = vld [vmem:[#allocation5 + $0x34] sm:$0xf]
        %v323 = vld [vmem:[#allocation5 + $0x38] sm:$0xf]
        %v324 = vld [vmem:[#allocation5 + $0x3c] sm:$0xf]
        %v341 = vunpack.c.l.b16 %v309
        %v342 = vunpack.c.l.b16 %v310
        %v343 = vunpack.c.l.b16 %v311
        %v344 = vunpack.c.l.b16 %v312
        %v345 = vunpack.c.l.b16 %v313
        %v346 = vunpack.c.l.b16 %v314
        %v347 = vunpack.c.l.b16 %v315
        %v348 = vunpack.c.l.b16 %v316
        %v349 = vunpack.c.l.b16 %v317
        %v350 = vunpack.c.l.b16 %v318
        %v351 = vunpack.c.l.b16 %v319
        %v352 = vunpack.c.l.b16 %v320
        %v353 = vunpack.c.l.b16 %v321
        %v354 = vunpack.c.l.b16 %v322
        %v355 = vunpack.c.l.b16 %v323
        %v356 = vunpack.c.l.b16 %v324
        %v357 = vpack.c.b16 %v342, %v341
        %v358 = vpack.c.b16 %v344, %v343
        %v359 = vpack.c.b16 %v346, %v345
        %v360 = vpack.c.b16 %v348, %v347
        %v361 = vpack.c.b16 %v350, %v349
        %v362 = vpack.c.b16 %v352, %v351
        %v363 = vpack.c.b16 %v354, %v353
        %v364 = vpack.c.b16 %v356, %v355
        %373 = vmatprep.subr.bf16.mxu0 0
        %374 = vmatpush1.bf16.msra.mxu0 %v357
        %375 = vmatprep.subr.bf16.mxu0 0
        %376 = vmatpush1.bf16.msra.mxu0 %v358
        %377 = vmatprep.subr.bf16.mxu0 0
        %378 = vmatpush1.bf16.msra.mxu0 %v359
        %379 = vmatprep.subr.bf16.mxu0 0
        %380 = vmatpush1.bf16.msra.mxu0 %v360
        %381 = vmatprep.subr.bf16.mxu0 0
        %382 = vmatpush1.bf16.msra.mxu0 %v361
        %383 = vmatprep.subr.bf16.mxu0 0
        %384 = vmatpush1.bf16.msra.mxu0 %v362
        %385 = vmatprep.subr.bf16.mxu0 0
        %386 = vmatpush1.bf16.msra.mxu0 %v363
        %387 = vmatprep.subr.bf16.mxu0 0
        %388 = vmatpush1.bf16.msra.mxu0 %v364
        %389 = vmatprep.subr.bf16.mxu0 0
        %390 = vmatpush1.bf16.msra.mxu0 0
        %391 = vmatprep.subr.bf16.mxu0 0
        %392 = vmatpush1.bf16.msra.mxu0 0
        %393 = vmatprep.subr.bf16.mxu0 0
        %394 = vmatpush1.bf16.msra.mxu0 0
        %395 = vmatprep.subr.bf16.mxu0 0
        %396 = vmatpush1.bf16.msra.mxu0 0
        %397 = vmatprep.subr.bf16.mxu0 0
        %398 = vmatpush1.bf16.msra.mxu0 0
        %399 = vmatprep.subr.bf16.mxu0 0
        %400 = vmatpush1.bf16.msra.mxu0 0
        %401 = vmatprep.subr.bf16.mxu0 0
        %402 = vmatpush1.bf16.msra.mxu0 0
        %403 = vmatprep.subr.bf16.mxu0 0
        %404 = vmatpush1.bf16.msra.mxu0 0
        %405 = vmatprep.mubr.bf16.mxu0 0
        %406 = vmatmul.mubr.bf16.gmra.mrb[0].mxu0 %v308
        %v407 = vpop.f32.mrb[0].mxu0
        %v408 = vadd.f32 0.0, %v407
        %v409 = vpop.f32.mrb[0].mxu0
        %v410 = vpop.f32.mrb[0].mxu0
        %v411 = vpop.f32.mrb[0].mxu0
        %412 = vdwg.mxu0
        %v413 = vld [vmem:[%s2] sm:$0x1]
        %v415 = vlaneseq
        %v416 = vshrl.u32 %v415, 7
        %v417 = vsub.s32 0, %v416
        %v418 = vrot.slane %v413, %v417
        %vm420 = vcmp.ge.f32.partialorder %v408, %v418
        %v421 = vsel %vm420, 1.0, 0.0
        %v422 = vpack.c.bf16 %v421, %v421
        %423 = vst [vmem:[%s299] sm:$0xf] %v422
        %v424 = vld [vmem:[#allocation7] sm:$0xf]
        %v425 = vld [vmem:[#allocation7 + $0x4] sm:$0xf]
        %v426 = vld [vmem:[#allocation7 + $0x8] sm:$0xf]
        %v427 = vld [vmem:[#allocation7 + $0xc] sm:$0xf]
        %v428 = vld [vmem:[#allocation7 + $0x10] sm:$0xf]
        %v429 = vld [vmem:[#allocation7 + $0x14] sm:$0xf]
        %v430 = vld [vmem:[#allocation7 + $0x18] sm:$0xf]
        %v431 = vld [vmem:[#allocation7 + $0x1c] sm:$0xf]
        %v432 = vld [vmem:[#allocation7 + $0x20] sm:$0xf]
        %v433 = vld [vmem:[#allocation7 + $0x24] sm:$0xf]
        %v434 = vld [vmem:[#allocation7 + $0x28] sm:$0xf]
        %v435 = vld [vmem:[#allocation7 + $0x2c] sm:$0xf]
        %v436 = vld [vmem:[#allocation7 + $0x30] sm:$0xf]
        %v437 = vld [vmem:[#allocation7 + $0x34] sm:$0xf]
        %v438 = vld [vmem:[#allocation7 + $0x38] sm:$0xf]
        %v439 = vld [vmem:[#allocation7 + $0x3c] sm:$0xf]
        %v456 = vunpack.c.l.b16 %v424
        %v457 = vunpack.c.l.b16 %v425
        %v458 = vunpack.c.l.b16 %v426
        %v459 = vunpack.c.l.b16 %v427
        %v460 = vunpack.c.l.b16 %v428
        %v461 = vunpack.c.l.b16 %v429
        %v462 = vunpack.c.l.b16 %v430
        %v463 = vunpack.c.l.b16 %v431
        %v464 = vunpack.c.l.b16 %v432
        %v465 = vunpack.c.l.b16 %v433
        %v466 = vunpack.c.l.b16 %v434
        %v467 = vunpack.c.l.b16 %v435
        %v468 = vunpack.c.l.b16 %v436
        %v469 = vunpack.c.l.b16 %v437
        %v470 = vunpack.c.l.b16 %v438
        %v471 = vunpack.c.l.b16 %v439
        %v472 = vpack.c.b16 %v457, %v456
        %v473 = vpack.c.b16 %v459, %v458
        %v474 = vpack.c.b16 %v461, %v460
        %v475 = vpack.c.b16 %v463, %v462
        %v476 = vpack.c.b16 %v465, %v464
        %v477 = vpack.c.b16 %v467, %v466
        %v478 = vpack.c.b16 %v469, %v468
        %v479 = vpack.c.b16 %v471, %v470
        %488 = vmatprep.subr.bf16.mxu0 0
        %489 = vmatpush1.bf16.msra.mxu0 %v472
        %490 = vmatprep.subr.bf16.mxu0 0
        %491 = vmatpush1.bf16.msra.mxu0 %v473
        %492 = vmatprep.subr.bf16.mxu0 0
        %493 = vmatpush1.bf16.msra.mxu0 %v474
        %494 = vmatprep.subr.bf16.mxu0 0
        %495 = vmatpush1.bf16.msra.mxu0 %v475
        %496 = vmatprep.subr.bf16.mxu0 0
        %497 = vmatpush1.bf16.msra.mxu0 %v476
        %498 = vmatprep.subr.bf16.mxu0 0
        %499 = vmatpush1.bf16.msra.mxu0 %v477
        %500 = vmatprep.subr.bf16.mxu0 0
        %501 = vmatpush1.bf16.msra.mxu0 %v478
        %502 = vmatprep.subr.bf16.mxu0 0
        %503 = vmatpush1.bf16.msra.mxu0 %v479
        %504 = vmatprep.subr.bf16.mxu0 0
        %505 = vmatpush1.bf16.msra.mxu0 0
        %506 = vmatprep.subr.bf16.mxu0 0
        %507 = vmatpush1.bf16.msra.mxu0 0
        %508 = vmatprep.subr.bf16.mxu0 0
        %509 = vmatpush1.bf16.msra.mxu0 0
        %510 = vmatprep.subr.bf16.mxu0 0
        %511 = vmatpush1.bf16.msra.mxu0 0
        %512 = vmatprep.subr.bf16.mxu0 0
        %513 = vmatpush1.bf16.msra.mxu0 0
        %514 = vmatprep.subr.bf16.mxu0 0
        %515 = vmatpush1.bf16.msra.mxu0 0
        %516 = vmatprep.subr.bf16.mxu0 0
        %517 = vmatpush1.bf16.msra.mxu0 0
        %518 = vmatprep.subr.bf16.mxu0 0
        %519 = vmatpush1.bf16.msra.mxu0 0
        %520 = vmatprep.mubr.bf16.mxu0 0
        %521 = vmatmul.mubr.bf16.gmra.mrb[0].mxu0 %v422
        %v522 = vpop.f32.mrb[0].mxu0
        %v523 = vadd.f32 0.0, %v522
        %v524 = vpop.f32.mrb[0].mxu0
        %v525 = vpop.f32.mrb[0].mxu0
        %v526 = vpop.f32.mrb[0].mxu0
        %527 = vdwg.mxu0
        %v528 = vld [vmem:[%s4] sm:$0x1]
        %v530 = vlaneseq
        %v531 = vshrl.u32 %v530, 7
        %v532 = vsub.s32 0, %v531
        %v533 = vrot.slane %v528, %v532
        %vm535 = vcmp.ge.f32.partialorder %v523, %v533
        %v536 = vsel %vm535, 1.0, 0.0
        %v537 = vpack.c.bf16 %v536, %v536
        %538 = vst [vmem:[%s306] sm:$0xf] %v537
        %s539 = sand.u32 %s146, 1
        %s540 = scalar_lea.sflag [#allocation4], %s539
        %s541 = sand.u32 %s146, 1
        %s542 = smul.addr %s541, 4
        %s543 = scalar_lea.vmem [#allocation8], %s542
        %s544 = sand.u32 %s172, 1
        %s545 = scalar_lea.sflag [#allocation10], %s544
        %s546 = sand.u32 %s172, 1
        %s547 = smul.addr %s546, 4
        %s548 = scalar_lea.vmem [#allocation9], %s547
        // Predicated region
        $region53: #{tpu_custom_call.1} parent=39 // pred_check
          %p549 = pneg %p156
        $region54: #{tpu_custom_call.1} parent=39 // pred_check_branch
          %551 = sbr.rel (%p549) target = $region56
        $region55: #{tpu_custom_call.1} parent=39 // pred_region
          %s553 = ssub.s32 64, 64
          %554 = vsyncadd %s540, %s553
          %s555 = smul.addr %s28, 64
          %s556 = scalar_lea.hbm %s5, %s555
          %s558 = sshll.u32 %s543, 4
          %s559 = int_to_ptr.vmem [resolvable:$true] %s558
          %561 = dma.vmem_to_hbm [thread:$0]  %s559, 64, %s556, %s540
        $region56: #{tpu_custom_call.1} parent=39 // pred_fallthru
          _
        // Predicated region
        $region57: #{tpu_custom_call.1} parent=39 // pred_check
          %p562 = pneg %p182
        $region58: #{tpu_custom_call.1} parent=39 // pred_check_branch
          %564 = sbr.rel (%p562) target = $region60
        $region59: #{tpu_custom_call.1} parent=39 // pred_region
          %s566 = ssub.s32 64, 64
          %567 = vsyncadd %s545, %s566
          %s568 = smul.addr %s28, 64
          %s569 = scalar_lea.hbm %s6, %s568
          %s571 = sshll.u32 %s548, 4
          %s572 = int_to_ptr.vmem [resolvable:$true] %s571
          %574 = dma.vmem_to_hbm [thread:$0]  %s572, 64, %s569, %s545
        $region60: #{tpu_custom_call.1} parent=39 // pred_fallthru
          _
      $region40: #{tpu_custom_call.1} parent=5 // pred_fallthru
        _
      %p575 = scmp.le.s32.totalorder 2, %s23
      // Predicated region
      $region61: #{tpu_custom_call.1} parent=5 // pred_check
        %p576 = pneg %p575
      $region62: #{tpu_custom_call.1} parent=5 // pred_check_branch
        %578 = sbr.rel (%p576) target = $region64
      $region63: #{tpu_custom_call.1} parent=5 // pred_region
        %s579 = ssub.s32 %s23, 2
        // Predicated region
        $region65: #{tpu_custom_call.1} parent=63 // pred_check
          %p580 = pneg %p162
        $region66: #{tpu_custom_call.1} parent=63 // pred_check_branch
          %582 = sbr.rel (%p580) target = $region68
        $region67: #{tpu_custom_call.1} parent=63 // pred_region
          %s583 = sand.u32 %s147, 1
          %s584 = scalar_lea.sflag [#allocation4], %s583
          %s585 = sand.u32 %s147, 1
          %s586 = smul.addr %s585, 4
          %s587 = scalar_lea.vmem [#allocation8], %s586
          %588 = dma.done %s584, 64
        $region68: #{tpu_custom_call.1} parent=63 // pred_fallthru
          _
        // Predicated region
        $region69: #{tpu_custom_call.1} parent=63 // pred_check
          %p589 = pneg %p188
        $region70: #{tpu_custom_call.1} parent=63 // pred_check_branch
          %591 = sbr.rel (%p589) target = $region72
        $region71: #{tpu_custom_call.1} parent=63 // pred_region
          %s592 = sand.u32 %s173, 1
          %s593 = scalar_lea.sflag [#allocation10], %s592
          %s594 = sand.u32 %s173, 1
          %s595 = smul.addr %s594, 4
          %s596 = scalar_lea.vmem [#allocation9], %s595
          %597 = dma.done %s593, 64
        $region72: #{tpu_custom_call.1} parent=63 // pred_fallthru
          _
      $region64: #{tpu_custom_call.1} parent=5 // pred_fallthru
        _
    $region6: #{tpu_custom_call.1} parent=1 // loop_footer
      %s27 = sadd.s32 1, %s23
    $region7: #{tpu_custom_call.1} parent=1 // loop_footer_branch
      %22 = sbr.rel target = $region3
    $region8: #{tpu_custom_call.1} parent=1 // loop_exit
      _
    %598 = vsyncpa [#allocation3], 1
    %s599 = scalar_lea.sflag [#allocation3], 1
    %600 = vsyncpa %s599, 1
    %601 = vsyncpa [#allocation6], 1
    %602 = vsyncpa [#allocation4], 1
    %s603 = scalar_lea.sflag [#allocation4], 1
    %604 = vsyncpa %s603, 1
    %605 = vsyncpa [#allocation10], 1
    %s606 = scalar_lea.sflag [#allocation10], 1
    %607 = vsyncpa %s606, 1

</llo_original>
